<compile_context>
chip_gen: v7x
topology: tpu7x:2x2x1
jax: 0.10.0
libtpu: 0.0.40
codegen_flags: <defaults>
</compile_context>

<pallas_src>
import functools

import jax
import jax.numpy as jnp
from jax.experimental import pallas as pl
from jax.experimental.pallas import tpu as pltpu

OUT_PAD = 128          # lane-dense output width (padded head, sliced in wrapper)
BATCH_TILE_MAX = 2048  # rows per grid step; 2 x bt x 128 x 2B output tile ~1 MiB
BATCH_ALIGN = 16       # bf16 sublane packing => batch tiles in multiples of 16


def _leaky_relu(x, slope=0.01):
    return jnp.where(x > 0, x, slope * x)


def _qnet_kernel(s_ref, a_ref, w1s_ref, w1a_ref, b1_ref,
                 w2_ref, b2_ref, w3_ref, b3_ref, o_ref):
    # Fused concat: cat([s, a], -1) @ W1  ==  s @ W1_s + a @ W1_a
    h = (jnp.dot(s_ref[...].astype(jnp.bfloat16), w1s_ref[...],
                 preferred_element_type=jnp.float32)
         + jnp.dot(a_ref[...].astype(jnp.bfloat16), w1a_ref[...],
                   preferred_element_type=jnp.float32)
         + b1_ref[...])
    h = _leaky_relu(h)                                   # f32 elementwise (v5e-safe)

    h = jnp.dot(h.astype(jnp.bfloat16), w2_ref[...],
                preferred_element_type=jnp.float32) + b2_ref[...]
    h = _leaky_relu(h)

    q = jnp.dot(h.astype(jnp.bfloat16), w3_ref[...],
                preferred_element_type=jnp.float32) + b3_ref[...]
    o_ref[...] = q.astype(o_ref.dtype)                   # (bt, 128) unmasked bf16 vst


def _round_up(x, m):
    return (x + m - 1) // m * m


def _cdiv(a, b):
    return -(-a // b)


def _pick_tiling(batch):
    """Balanced batch tiling -> (tile_rows, padded_batch)."""
    bp = _round_up(batch, BATCH_ALIGN)
    n_tiles = _cdiv(bp, BATCH_TILE_MAX)
    if bp >= 2 * BATCH_ALIGN:
        # Force an even, >=2 step count so v7x's two TensorCores both get work.
        n_tiles = max(n_tiles, 2)
        if n_tiles % 2:
            n_tiles += 1
    bt = _round_up(_cdiv(bp, n_tiles), BATCH_ALIGN)
    n_tiles = _cdiv(bp, bt)          # rebalance after rounding bt up
    return bt, n_tiles * bt


@functools.partial(jax.jit, static_argnames=("out_dims",))
def qnetwork_forward(state, action, params, *, out_dims):
    """state: (B, state_dims), action: (B, action_dims) -> (B, out_dims) f32."""
    w1s, w1a, b1, w2, b2, w3, b3 = params
    B, sd = state.shape
    ad = action.shape[1]
    n_out = w3.shape[1]                                   # 128 (padded head)

    bt, Bp = _pick_tiling(B)
    if Bp != B:
        pad = Bp - B
        state = jnp.pad(state, ((0, pad), (0, 0)))
        action = jnp.pad(action, ((0, pad), (0, 0)))

    # Constant index_map => weights/biases DMA'd once and held resident in VMEM.
    rep = lambda shape: pl.BlockSpec(shape, lambda i, _n=len(shape): (0,) * _n)

    out = pl.pallas_call(
        _qnet_kernel,
        out_shape=jax.ShapeDtypeStruct((Bp, n_out), jnp.bfloat16),
        grid=(Bp // bt,),
        in_specs=[
            pl.BlockSpec((bt, sd), lambda i: (i, 0)),     # state tile
            pl.BlockSpec((bt, ad), lambda i: (i, 0)),     # action tile
            rep(w1s.shape), rep(w1a.shape), rep(b1.shape),
            rep(w2.shape), rep(b2.shape),
            rep(w3.shape), rep(b3.shape),
        ],
        out_specs=pl.BlockSpec((bt, n_out), lambda i: (i, 0)),
        compiler_params=pltpu.CompilerParams(
            dimension_semantics=("parallel",)),           # v7x: batch over 2 TCs
    )(state, action, w1s, w1a, b1, w2, b2, w3, b3)
    return out[:B, :out_dims].astype(jnp.float32)


def init_qnetwork_params(key, state_dims, action_dims, fc1_dims, fc2_dims, output_dims):
    """Mirrors the PyTorch module's init.

    - input_layer / fc1 weights: kaiming_normal_(fan_in, leaky_relu, a=0.01)
    - fc2 weight: uniform(-0.001, 0.001)
    - biases: PyTorch Linear default uniform(-1/sqrt(fan_in), 1/sqrt(fan_in))
    Weights stored bf16, transposed to (in, out); W1 split into (state, action)
    halves; the output head is zero-padded to 128 lanes. Biases stay f32 (1, out).
    """
    input_dims = state_dims + action_dims
    k1, k2, k3, kb1, kb2, kb3 = jax.random.split(key, 6)

    def kaiming_normal(k, fan_in, fan_out, a=0.01):
        gain = jnp.sqrt(2.0 / (1.0 + a * a))
        std = gain / jnp.sqrt(jnp.asarray(fan_in, jnp.float32))
        w = jax.random.normal(k, (fan_out, fan_in), jnp.float32) * std
        return w.T                                        # (in, out)

    def linear_bias(k, fan_in, fan_out):
        bound = 1.0 / jnp.sqrt(jnp.asarray(fan_in, jnp.float32))
        return jax.random.uniform(k, (1, fan_out), jnp.float32, -bound, bound)

    w1 = kaiming_normal(k1, input_dims, fc1_dims)
    w1s = w1[:state_dims].astype(jnp.bfloat16)            # (state_dims, fc1)
    w1a = w1[state_dims:].astype(jnp.bfloat16)            # (action_dims, fc1)
    b1 = linear_bias(kb1, input_dims, fc1_dims)

    w2 = kaiming_normal(k2, fc1_dims, fc2_dims).astype(jnp.bfloat16)
    b2 = linear_bias(kb2, fc1_dims, fc2_dims)

    w3 = jax.random.uniform(k3, (output_dims, fc2_dims), jnp.float32, -0.001, 0.001).T
    b3 = linear_bias(kb3, fc2_dims, output_dims)
    w3p = (jnp.zeros((fc2_dims, OUT_PAD), jnp.float32)
           .at[:, :output_dims].set(w3).astype(jnp.bfloat16))
    b3p = jnp.zeros((1, OUT_PAD), jnp.float32).at[:, :output_dims].set(b3)

    # TODO(synk): checkpoint save/load and the Adam optimizer from the PyTorch
    # module are host/training concerns with no Pallas equivalent.
    return (w1s, w1a, b1, w2, b2, w3p, b3p)


def _reference(state, action, params, out_dims):
    """Pure-JAX reference using the same bf16-weight / f32-accumulate math."""
    w1s, w1a, b1, w2, b2, w3, b3 = params

    def dot32(x, w):
        return jnp.dot(x.astype(jnp.bfloat16), w, preferred_element_type=jnp.float32)

    h = dot32(state, w1s) + dot32(action, w1a) + b1
    h = jnp.where(h > 0, h, 0.01 * h)
    h = dot32(h, w2) + b2
    h = jnp.where(h > 0, h, 0.01 * h)
    q = dot32(h, w3) + b3
    # Match the kernel's bf16 output store + wrapper f32 upcast.
    return q.astype(jnp.bfloat16).astype(jnp.float32)[:, :out_dims]


if __name__ == "__main__":
    key = jax.random.PRNGKey(0)
    k_state, k_action, k_params, k_big = jax.random.split(key, 4)

    # Small shapes consistent with the module (state+action = input_dims).
    B, state_dims, action_dims = 8, 6, 2
    fc1_dims, fc2_dims, output_dims = 32, 32, 1

    params = init_qnetwork_params(k_params, state_dims, action_dims,
                                  fc1_dims, fc2_dims, output_dims)

    state = jax.random.normal(k_state, (B, state_dims), jnp.float32)
    action = jax.random.normal(k_action, (B, action_dims), jnp.float32)

    # Tolerance: outputs pass through a bf16 store; 4e-3 covers one bf16 ulp
    # for |q| <= ~1 while the underlying f32 math paths are identical.
    q = qnetwork_forward(state, action, params, out_dims=output_dims)
    jax.block_until_ready(q)
    assert q.shape == (B, output_dims)
    q_ref = _reference(state, action, params, output_dims)
    assert jnp.allclose(q, q_ref, atol=4e-3, rtol=1e-3)

    # Exercise the balanced multi-tile grid path with a bigger, ragged batch
    # (B=1030 -> 2 tiles of 528 rows, padded batch 1056).
    B2 = 1030
    kb_s, kb_a = jax.random.split(k_big)
    state2 = jax.random.normal(kb_s, (B2, state_dims), jnp.float32)
    action2 = jax.random.normal(kb_a, (B2, action_dims), jnp.float32)
    q2 = qnetwork_forward(state2, action2, params, out_dims=output_dims)
    jax.block_until_ready(q2)
    assert q2.shape == (B2, output_dims)
    q2_ref = _reference(state2, action2, params, output_dims)
    assert jnp.allclose(q2, q2_ref, atol=4e-3, rtol=1e-3)

    print("KERNEL_OK")
</pallas_src>

<mosaic_0001>
module attributes {stable_mosaic.version = 11 : i64} {
  func.func @_qnet_kernel(%arg0: i32, %arg1: memref<16x6xf32, #tpu.memory_space<vmem>>, %arg2: memref<16x2xf32, #tpu.memory_space<vmem>>, %arg3: memref<6x32xbf16, #tpu.memory_space<vmem>>, %arg4: memref<2x32xbf16, #tpu.memory_space<vmem>>, %arg5: memref<1x32xf32, #tpu.memory_space<vmem>>, %arg6: memref<32x32xbf16, #tpu.memory_space<vmem>>, %arg7: memref<1x32xf32, #tpu.memory_space<vmem>>, %arg8: memref<32x128xbf16, #tpu.memory_space<vmem>>, %arg9: memref<1x128xf32, #tpu.memory_space<vmem>>, %arg10: memref<16x128xbf16, #tpu.memory_space<vmem>>) attributes {dimension_semantics = [#tpu.dimension_semantics<parallel>], iteration_bounds = array<i64: 1>, scalar_prefetch = 0 : i64, scratch_operands = 0 : i64, tpu.core_type = #tpu.core_type<tc>, window_params = [{transform_indices = @transform_0, window_bounds = array<i64: 16, 6>}, {transform_indices = @transform_1, window_bounds = array<i64: 16, 2>}, {pipeline_mode = #tpu.pipeline_mode<synchronous>, transform_indices = @transform_2, window_bounds = array<i64: 6, 32>}, {pipeline_mode = #tpu.pipeline_mode<synchronous>, transform_indices = @transform_3, window_bounds = array<i64: 2, 32>}, {pipeline_mode = #tpu.pipeline_mode<synchronous>, transform_indices = @transform_4, window_bounds = array<i64: 1, 32>}, {pipeline_mode = #tpu.pipeline_mode<synchronous>, transform_indices = @transform_5, window_bounds = array<i64: 32, 32>}, {pipeline_mode = #tpu.pipeline_mode<synchronous>, transform_indices = @transform_6, window_bounds = array<i64: 1, 32>}, {pipeline_mode = #tpu.pipeline_mode<synchronous>, transform_indices = @transform_7, window_bounds = array<i64: 32, 128>}, {pipeline_mode = #tpu.pipeline_mode<synchronous>, transform_indices = @transform_8, window_bounds = array<i64: 1, 128>}, {transform_indices = @transform_9, window_bounds = array<i64: 16, 128>}]} {
    %c0 = arith.constant 0 : index
    %c0_0 = arith.constant 0 : index
    %0 = vector.load %arg1[%c0, %c0_0] : memref<16x6xf32, #tpu.memory_space<vmem>>, vector<16x6xf32>
    %1 = arith.truncf %0 : vector<16x6xf32> to vector<16x6xbf16>
    %c0_1 = arith.constant 0 : index
    %c0_2 = arith.constant 0 : index
    %2 = vector.load %arg3[%c0_1, %c0_2] : memref<6x32xbf16, #tpu.memory_space<vmem>>, vector<6x32xbf16>
    %cst = arith.constant dense<0.000000e+00> : vector<16x32xf32>
    %3 = tpu.matmul %1, %2, %cst {dimension_numbers = #tpu.dot_dimension_numbers<[1], [0], [0], [1], [0, 0, 1, 1], [], []>} : vector<16x6xbf16>, vector<6x32xbf16>, vector<16x32xf32> -> vector<16x32xf32>
    %c0_3 = arith.constant 0 : index
    %c0_4 = arith.constant 0 : index
    %4 = vector.load %arg2[%c0_3, %c0_4] : memref<16x2xf32, #tpu.memory_space<vmem>>, vector<16x2xf32>
    %5 = arith.truncf %4 : vector<16x2xf32> to vector<16x2xbf16>
    %c0_5 = arith.constant 0 : index
    %c0_6 = arith.constant 0 : index
    %6 = vector.load %arg4[%c0_5, %c0_6] : memref<2x32xbf16, #tpu.memory_space<vmem>>, vector<2x32xbf16>
    %cst_7 = arith.constant dense<0.000000e+00> : vector<16x32xf32>
    %7 = tpu.matmul %5, %6, %cst_7 {dimension_numbers = #tpu.dot_dimension_numbers<[1], [0], [0], [1], [0, 0, 1, 1], [], []>} : vector<16x2xbf16>, vector<2x32xbf16>, vector<16x32xf32> -> vector<16x32xf32>
    %8 = arith.addf %3, %7 : vector<16x32xf32>
    %c0_8 = arith.constant 0 : index
    %c0_9 = arith.constant 0 : index
    %9 = vector.load %arg5[%c0_8, %c0_9] : memref<1x32xf32, #tpu.memory_space<vmem>>, vector<1x32xf32>
    %10 = vector.broadcast %9 : vector<1x32xf32> to vector<16x32xf32>
    %11 = arith.addf %8, %10 : vector<16x32xf32>
    %cst_10 = arith.constant 0.000000e+00 : f32
    %12 = vector.broadcast %cst_10 : f32 to vector<16x32xf32>
    %13 = arith.cmpf ogt, %11, %12 : vector<16x32xf32>
    %cst_11 = arith.constant 0.00999999977 : f32
    %14 = vector.broadcast %cst_11 : f32 to vector<16x32xf32>
    %15 = arith.mulf %14, %11 : vector<16x32xf32>
    %16 = arith.select %13, %11, %15 : vector<16x32xi1>, vector<16x32xf32>
    %17 = arith.truncf %16 : vector<16x32xf32> to vector<16x32xbf16>
    %c0_12 = arith.constant 0 : index
    %c0_13 = arith.constant 0 : index
    %18 = vector.load %arg6[%c0_12, %c0_13] : memref<32x32xbf16, #tpu.memory_space<vmem>>, vector<32x32xbf16>
    %cst_14 = arith.constant dense<0.000000e+00> : vector<16x32xf32>
    %19 = tpu.matmul %17, %18, %cst_14 {dimension_numbers = #tpu.dot_dimension_numbers<[1], [0], [0], [1], [0, 0, 1, 1], [], []>} : vector<16x32xbf16>, vector<32x32xbf16>, vector<16x32xf32> -> vector<16x32xf32>
    %c0_15 = arith.constant 0 : index
    %c0_16 = arith.constant 0 : index
    %20 = vector.load %arg7[%c0_15, %c0_16] : memref<1x32xf32, #tpu.memory_space<vmem>>, vector<1x32xf32>
    %21 = vector.broadcast %20 : vector<1x32xf32> to vector<16x32xf32>
    %22 = arith.addf %19, %21 : vector<16x32xf32>
    %cst_17 = arith.constant 0.000000e+00 : f32
    %23 = vector.broadcast %cst_17 : f32 to vector<16x32xf32>
    %24 = arith.cmpf ogt, %22, %23 : vector<16x32xf32>
    %cst_18 = arith.constant 0.00999999977 : f32
    %25 = vector.broadcast %cst_18 : f32 to vector<16x32xf32>
    %26 = arith.mulf %25, %22 : vector<16x32xf32>
    %27 = arith.select %24, %22, %26 : vector<16x32xi1>, vector<16x32xf32>
    %28 = arith.truncf %27 : vector<16x32xf32> to vector<16x32xbf16>
    %c0_19 = arith.constant 0 : index
    %c0_20 = arith.constant 0 : index
    %29 = vector.load %arg8[%c0_19, %c0_20] : memref<32x128xbf16, #tpu.memory_space<vmem>>, vector<32x128xbf16>
    %cst_21 = arith.constant dense<0.000000e+00> : vector<16x128xf32>
    %30 = tpu.matmul %28, %29, %cst_21 {dimension_numbers = #tpu.dot_dimension_numbers<[1], [0], [0], [1], [0, 0, 1, 1], [], []>} : vector<16x32xbf16>, vector<32x128xbf16>, vector<16x128xf32> -> vector<16x128xf32>
    %c0_22 = arith.constant 0 : index
    %c0_23 = arith.constant 0 : index
    %31 = vector.load %arg9[%c0_22, %c0_23] : memref<1x128xf32, #tpu.memory_space<vmem>>, vector<1x128xf32>
    %32 = vector.broadcast %31 : vector<1x128xf32> to vector<16x128xf32>
    %33 = arith.addf %30, %32 : vector<16x128xf32>
    %34 = arith.truncf %33 : vector<16x128xf32> to vector<16x128xbf16>
    %c0_24 = arith.constant 0 : index
    %c0_25 = arith.constant 0 : index
    %35 = vector.load %arg10[%c0_24, %c0_25] : memref<16x128xbf16, #tpu.memory_space<vmem>>, vector<16x128xbf16>
    tpu.vector_store %arg10[%c0_24, %c0_25], %34 {strides = array<i32>} : memref<16x128xbf16, #tpu.memory_space<vmem>>, vector<16x128xbf16>,
    return
  }
  func.func @transform_0(%arg0: i32) -> (i32, i32) {
    %c0_i32 = arith.constant 0 : i32
    %c0_i32_0 = arith.constant 0 : i32
    return %arg0, %c0_i32 : i32, i32
  }
  func.func @transform_1(%arg0: i32) -> (i32, i32) {
    %c0_i32 = arith.constant 0 : i32
    %c0_i32_0 = arith.constant 0 : i32
    return %arg0, %c0_i32 : i32, i32
  }
  func.func @transform_2(%arg0: i32) -> (i32, i32) {
    %c0_i32 = arith.constant 0 : i32
    %c0_i32_0 = arith.constant 0 : i32
    %c0_i32_1 = arith.constant 0 : i32
    return %c0_i32, %c0_i32_0 : i32, i32
  }
  func.func @transform_3(%arg0: i32) -> (i32, i32) {
    %c0_i32 = arith.constant 0 : i32
    %c0_i32_0 = arith.constant 0 : i32
    %c0_i32_1 = arith.constant 0 : i32
    return %c0_i32, %c0_i32_0 : i32, i32
  }
  func.func @transform_4(%arg0: i32) -> (i32, i32) {
    %c0_i32 = arith.constant 0 : i32
    %c0_i32_0 = arith.constant 0 : i32
    %c0_i32_1 = arith.constant 0 : i32
    return %c0_i32, %c0_i32_0 : i32, i32
  }
  func.func @transform_5(%arg0: i32) -> (i32, i32) {
    %c0_i32 = arith.constant 0 : i32
    %c0_i32_0 = arith.constant 0 : i32
    %c0_i32_1 = arith.constant 0 : i32
    return %c0_i32, %c0_i32_0 : i32, i32
  }
  func.func @transform_6(%arg0: i32) -> (i32, i32) {
    %c0_i32 = arith.constant 0 : i32
    %c0_i32_0 = arith.constant 0 : i32
    %c0_i32_1 = arith.constant 0 : i32
    return %c0_i32, %c0_i32_0 : i32, i32
  }
  func.func @transform_7(%arg0: i32) -> (i32, i32) {
    %c0_i32 = arith.constant 0 : i32
    %c0_i32_0 = arith.constant 0 : i32
    %c0_i32_1 = arith.constant 0 : i32
    return %c0_i32, %c0_i32_0 : i32, i32
  }
  func.func @transform_8(%arg0: i32) -> (i32, i32) {
    %c0_i32 = arith.constant 0 : i32
    %c0_i32_0 = arith.constant 0 : i32
    %c0_i32_1 = arith.constant 0 : i32
    return %c0_i32, %c0_i32_0 : i32, i32
  }
  func.func @transform_9(%arg0: i32) -> (i32, i32) {
    %c0_i32 = arith.constant 0 : i32
    %c0_i32_0 = arith.constant 0 : i32
    return %arg0, %c0_i32 : i32, i32
  }
}

</mosaic_0001>

<llo_original>
// kernel: qnetwork_forward.1
$region0: #{qnetwork_forward.1}
  #allocation0 [shape = 'u32[]', space=smem, size = 0x4, offset = 0x4, fixed_abs, tag = 'smem constant byte address 0x4 - core index']
  #allocation1 [shape = 'u32[144,128]{1,0:T(1,128)}', space=vmem, size = 0x12000, scoped, tag = 'internal scratch']
  %s0 = inlined_call_operand.vmem [shape: f32[16,6], index: 0, kind: input, shape index: {}]
  %s1 = inlined_call_operand.vmem [shape: f32[16,2], index: 1, kind: input, shape index: {}]
  %s2 = inlined_call_operand.vmem [shape: bf16[6,32], index: 2, kind: input, shape index: {}]
  %s3 = inlined_call_operand.vmem [shape: bf16[2,32], index: 3, kind: input, shape index: {}]
  %s4 = inlined_call_operand.vmem [shape: f32[1,32], index: 4, kind: input, shape index: {}]
  %s5 = inlined_call_operand.vmem [shape: bf16[32,32], index: 5, kind: input, shape index: {}]
  %s6 = inlined_call_operand.vmem [shape: f32[1,32], index: 6, kind: input, shape index: {}]
  %s7 = inlined_call_operand.vmem [shape: bf16[32,128], index: 7, kind: input, shape index: {}]
  %s8 = inlined_call_operand.vmem [shape: f32[1,128], index: 8, kind: input, shape index: {}]
  %s9 = inlined_call_operand.vmem [shape: bf16[16,128], index: 9, kind: output, shape index: {}]
  %s10 = sld [smem:[#allocation0]]
  $region46: #{qnetwork_forward.1} parent=0
    _
  %s12 = ssub.s32 1, %s10
  %s13 = scalar_select 0, %s12, %s10
  // Predicated region
  $region2: #{qnetwork_forward.1} parent=0 // pred_check
    _
  $region3: #{qnetwork_forward.1} parent=0 // pred_check_branch
    %15 = sbr.rel (0) target = $region5
  $region4: #{qnetwork_forward.1} parent=0 // pred_region
    _
  $region5: #{qnetwork_forward.1} parent=0 // pred_fallthru
    _
  // Predicated region
  $region6: #{qnetwork_forward.1} parent=0 // pred_check
    _
  $region7: #{qnetwork_forward.1} parent=0 // pred_check_branch
    %17 = sbr.rel (0) target = $region9
  $region8: #{qnetwork_forward.1} parent=0 // pred_region
    _
  $region9: #{qnetwork_forward.1} parent=0 // pred_fallthru
    _
  // Predicated region
  $region10: #{qnetwork_forward.1} parent=0 // pred_check
    _
  $region11: #{qnetwork_forward.1} parent=0 // pred_check_branch
    %19 = sbr.rel (0) target = $region13
  $region12: #{qnetwork_forward.1} parent=0 // pred_region
    _
  $region13: #{qnetwork_forward.1} parent=0 // pred_fallthru
    _
  // Predicated region
  $region14: #{qnetwork_forward.1} parent=0 // pred_check
    _
  $region15: #{qnetwork_forward.1} parent=0 // pred_check_branch
    %21 = sbr.rel (0) target = $region17
  $region16: #{qnetwork_forward.1} parent=0 // pred_region
    _
  $region17: #{qnetwork_forward.1} parent=0 // pred_fallthru
    _
  // Predicated region
  $region18: #{qnetwork_forward.1} parent=0 // pred_check
    _
  $region19: #{qnetwork_forward.1} parent=0 // pred_check_branch
    %23 = sbr.rel (0) target = $region21
  $region20: #{qnetwork_forward.1} parent=0 // pred_region
    _
  $region21: #{qnetwork_forward.1} parent=0 // pred_fallthru
    _
  // Predicated region
  $region22: #{qnetwork_forward.1} parent=0 // pred_check
    _
  $region23: #{qnetwork_forward.1} parent=0 // pred_check_branch
    %25 = sbr.rel (0) target = $region25
  $region24: #{qnetwork_forward.1} parent=0 // pred_region
    _
  $region25: #{qnetwork_forward.1} parent=0 // pred_fallthru
    _
  // Predicated region
  $region26: #{qnetwork_forward.1} parent=0 // pred_check
    _
  $region27: #{qnetwork_forward.1} parent=0 // pred_check_branch
    %27 = sbr.rel (0) target = $region29
  $region28: #{qnetwork_forward.1} parent=0 // pred_region
    _
  $region29: #{qnetwork_forward.1} parent=0 // pred_fallthru
    _
  // Predicated region
  $region30: #{qnetwork_forward.1} parent=0 // pred_check
    _
  $region31: #{qnetwork_forward.1} parent=0 // pred_check_branch
    %29 = sbr.rel (0) target = $region33
  $region32: #{qnetwork_forward.1} parent=0 // pred_region
    _
  $region33: #{qnetwork_forward.1} parent=0 // pred_fallthru
    _
  // Predicated region
  $region34: #{qnetwork_forward.1} parent=0 // pred_check
    _
  $region35: #{qnetwork_forward.1} parent=0 // pred_check_branch
    %31 = sbr.rel (0) target = $region37
  $region36: #{qnetwork_forward.1} parent=0 // pred_region
    _
  $region37: #{qnetwork_forward.1} parent=0 // pred_fallthru
    _
  %v33 = vld [vmem:[%s0] sm:$0xff]
  %v34 = vld [vmem:[%s0 + $0x8] sm:$0xff]
  %v35 = vpack.c.bf16 %v34, %v33
  %v36 = vld [vmem:[%s2] sm:$0x7]
  %v37 = vld [vmem:[%s1] sm:$0xff]
  %v38 = vld [vmem:[%s1 + $0x8] sm:$0xff]
  %v39 = vpack.c.bf16 %v38, %v37
  %v40 = vld [vmem:[%s3] sm:$0x1]
  %vm41 = vcmask 15360
  %v43 = vsel %vm41, %v39, 0
  %vm45 = vcmask 1040384
  %v47 = vsel %vm45, %v40, 0
  %49 = vmatprep.subr.bf16.mxu0 0
  %50 = vmatpush1.bf16.msra.mxu0 %v47
  %51 = vmatprep.subr.bf16.mxu0 0
  %52 = vmatpush1.bf16.msra.mxu0 0
  %53 = vmatprep.subr.bf16.mxu0 0
  %54 = vmatpush1.bf16.msra.mxu0 0
  %55 = vmatprep.subr.bf16.mxu0 0
  %56 = vmatpush1.bf16.msra.mxu0 0
  %57 = vmatprep.subr.bf16.mxu0 0
  %58 = vmatpush1.bf16.msra.mxu0 0
  %59 = vmatprep.subr.bf16.mxu0 0
  %60 = vmatpush1.bf16.msra.mxu0 0
  %61 = vmatprep.subr.bf16.mxu0 0
  %62 = vmatpush1.bf16.msra.mxu0 0
  %63 = vmatprep.subr.bf16.mxu0 0
  %64 = vmatpush1.bf16.msra.mxu0 0
  %65 = vmatprep.subr.bf16.mxu0 0
  %66 = vmatpush1.bf16.msra.mxu0 0
  %67 = vmatprep.subr.bf16.mxu0 0
  %68 = vmatpush1.bf16.msra.mxu0 0
  %69 = vmatprep.subr.bf16.mxu0 0
  %70 = vmatpush1.bf16.msra.mxu0 0
  %71 = vmatprep.subr.bf16.mxu0 0
  %72 = vmatpush1.bf16.msra.mxu0 0
  %73 = vmatprep.subr.bf16.mxu0 0
  %74 = vmatpush1.bf16.msra.mxu0 0
  %75 = vmatprep.subr.bf16.mxu0 0
  %76 = vmatpush1.bf16.msra.mxu0 0
  %77 = vmatprep.subr.bf16.mxu0 0
  %78 = vmatpush1.bf16.msra.mxu0 0
  %79 = vmatprep.subr.bf16.mxu0 0
  %80 = vmatpush1.bf16.msra.mxu0 0
  %81 = vmatprep.mubr.bf16.mxu0 0
  %82 = vmatmul.mubr.bf16.gmra.mrb[0].mxu0 %v43
  %v83 = vpop.f32.mrb[0].mxu0
  %v84 = vadd.f32 0.0, %v83
  %v85 = vpop.f32.mrb[0].mxu0
  %v86 = vpop.f32.mrb[0].mxu0
  %v87 = vadd.f32 0.0, %v86
  %v88 = vpop.f32.mrb[0].mxu0
  %89 = vdwg.mxu0
  %vm90 = vcmask 48128
  %v92 = vsel %vm90, %v35, 0
  %vm94 = vcmask 1042432
  %v96 = vsel %vm94, %v36, 0
  %98 = vmatprep.subr.bf16.mxu0 0
  %99 = vmatpush1.bf16.msra.mxu0 %v96
  %100 = vmatprep.subr.bf16.mxu0 0
  %101 = vmatpush1.bf16.msra.mxu0 0
  %102 = vmatprep.subr.bf16.mxu0 0
  %103 = vmatpush1.bf16.msra.mxu0 0
  %104 = vmatprep.subr.bf16.mxu0 0
  %105 = vmatpush1.bf16.msra.mxu0 0
  %106 = vmatprep.subr.bf16.mxu0 0
  %107 = vmatpush1.bf16.msra.mxu0 0
  %108 = vmatprep.subr.bf16.mxu0 0
  %109 = vmatpush1.bf16.msra.mxu0 0
  %110 = vmatprep.subr.bf16.mxu0 0
  %111 = vmatpush1.bf16.msra.mxu0 0
  %112 = vmatprep.subr.bf16.mxu0 0
  %113 = vmatpush1.bf16.msra.mxu0 0
  %114 = vmatprep.subr.bf16.mxu0 0
  %115 = vmatpush1.bf16.msra.mxu0 0
  %116 = vmatprep.subr.bf16.mxu0 0
  %117 = vmatpush1.bf16.msra.mxu0 0
  %118 = vmatprep.subr.bf16.mxu0 0
  %119 = vmatpush1.bf16.msra.mxu0 0
  %120 = vmatprep.subr.bf16.mxu0 0
  %121 = vmatpush1.bf16.msra.mxu0 0
  %122 = vmatprep.subr.bf16.mxu0 0
  %123 = vmatpush1.bf16.msra.mxu0 0
  %124 = vmatprep.subr.bf16.mxu0 0
  %125 = vmatpush1.bf16.msra.mxu0 0
  %126 = vmatprep.subr.bf16.mxu0 0
  %127 = vmatpush1.bf16.msra.mxu0 0
  %128 = vmatprep.subr.bf16.mxu0 0
  %129 = vmatpush1.bf16.msra.mxu0 0
  %130 = vmatprep.mubr.bf16.mxu0 0
  %131 = vmatmul.mubr.bf16.gmra.mrb[0].mxu0 %v92
  %v132 = vpop.f32.mrb[0].mxu0
  %v133 = vadd.f32 %v84, %v132
  %v134 = vpop.f32.mrb[0].mxu0
  %v135 = vpop.f32.mrb[0].mxu0
  %v136 = vadd.f32 %v87, %v135
  %v137 = vpop.f32.mrb[0].mxu0
  %138 = vdwg.mxu0
  %v139 = vld [vmem:[%s4] sm:$0x1]
  %v141 = vlaneseq
  %v142 = vshrl.u32 %v141, 7
  %v143 = vsub.s32 0, %v142
  %v144 = vrot.slane %v139, %v143
  %v146 = vadd.f32 %v133, %v144
  %v147 = vadd.f32 %v136, %v144
  %vm148 = vcmp.gt.f32.partialorder %v146, 0.0
  %vm149 = vcmp.gt.f32.partialorder %v147, 0.0
  %v150 = vmul.f32 %v146, 0.01
  %v151 = vmul.f32 %v147, 0.01
  %v152 = vsel %vm148, %v146, %v150
  %v153 = vsel %vm149, %v147, %v151
  %v154 = vpack.c.bf16 %v153, %v152
  %v155 = vld [vmem:[%s5] sm:$0xf]
  %v156 = vld [vmem:[%s5 + $0x4] sm:$0xf]
  %v157 = vld [vmem:[%s5 + $0x8] sm:$0xf]
  %v158 = vld [vmem:[%s5 + $0xc] sm:$0xf]
  %v159 = vld [vmem:[%s6] sm:$0x1]
  %v161 = vlaneseq
  %v162 = vshrl.u32 %v161, 7
  %v163 = vsub.s32 0, %v162
  %v164 = vrot.slane %v159, %v163
  %v170 = vunpack.c.l.b16 %v155
  %v171 = vunpack.c.l.b16 %v156
  %v172 = vunpack.c.l.b16 %v157
  %v173 = vunpack.c.l.b16 %v158
  %v174 = vpack.c.b16 %v171, %v170
  %v175 = vpack.c.b16 %v173, %v172
  %vm178 = vcmask 261120
  %v180 = vsel %vm178, %v154, 0
  %182 = vmatprep.subr.bf16.mxu0 0
  %183 = vmatpush1.bf16.msra.mxu0 %v174
  %184 = vmatprep.subr.bf16.mxu0 0
  %185 = vmatpush1.bf16.msra.mxu0 %v175
  %186 = vmatprep.subr.bf16.mxu0 0
  %187 = vmatpush1.bf16.msra.mxu0 0
  %188 = vmatprep.subr.bf16.mxu0 0
  %189 = vmatpush1.bf16.msra.mxu0 0
  %190 = vmatprep.subr.bf16.mxu0 0
  %191 = vmatpush1.bf16.msra.mxu0 0
  %192 = vmatprep.subr.bf16.mxu0 0
  %193 = vmatpush1.bf16.msra.mxu0 0
  %194 = vmatprep.subr.bf16.mxu0 0
  %195 = vmatpush1.bf16.msra.mxu0 0
  %196 = vmatprep.subr.bf16.mxu0 0
  %197 = vmatpush1.bf16.msra.mxu0 0
  %198 = vmatprep.subr.bf16.mxu0 0
  %199 = vmatpush1.bf16.msra.mxu0 0
  %200 = vmatprep.subr.bf16.mxu0 0
  %201 = vmatpush1.bf16.msra.mxu0 0
  %202 = vmatprep.subr.bf16.mxu0 0
  %203 = vmatpush1.bf16.msra.mxu0 0
  %204 = vmatprep.subr.bf16.mxu0 0
  %205 = vmatpush1.bf16.msra.mxu0 0
  %206 = vmatprep.subr.bf16.mxu0 0
  %207 = vmatpush1.bf16.msra.mxu0 0
  %208 = vmatprep.subr.bf16.mxu0 0
  %209 = vmatpush1.bf16.msra.mxu0 0
  %210 = vmatprep.subr.bf16.mxu0 0
  %211 = vmatpush1.bf16.msra.mxu0 0
  %212 = vmatprep.subr.bf16.mxu0 0
  %213 = vmatpush1.bf16.msra.mxu0 0
  %214 = vmatprep.mubr.bf16.mxu0 0
  %215 = vmatmul.mubr.bf16.gmra.mrb[0].mxu0 %v180
  %v216 = vpop.f32.mrb[0].mxu0
  %v217 = vadd.f32 %v164, %v216
  %v218 = vpop.f32.mrb[0].mxu0
  %v219 = vpop.f32.mrb[0].mxu0
  %v220 = vadd.f32 %v164, %v219
  %v221 = vpop.f32.mrb[0].mxu0
  %222 = vdwg.mxu0
  %vm223 = vcmp.gt.f32.partialorder %v217, 0.0
  %vm224 = vcmp.gt.f32.partialorder %v220, 0.0
  %v225 = vmul.f32 %v217, 0.01
  %v226 = vmul.f32 %v220, 0.01
  %v227 = vsel %vm223, %v217, %v225
  %v228 = vsel %vm224, %v220, %v226
  %v229 = vpack.c.bf16 %v228, %v227
  %v230 = vld [vmem:[%s7] sm:$0xf]
  %v231 = vld [vmem:[%s7 + $0x4] sm:$0xf]
  %v232 = vld [vmem:[%s7 + $0x8] sm:$0xf]
  %v233 = vld [vmem:[%s7 + $0xc] sm:$0xf]
  %v234 = vld [vmem:[%s8] sm:$0x1]
  %v236 = vlaneseq
  %v237 = vshrl.u32 %v236, 7
  %v238 = vsub.s32 0, %v237
  %v239 = vrot.slane %v234, %v238
  %v245 = vunpack.c.l.b16 %v230
  %v246 = vunpack.c.l.b16 %v231
  %v247 = vunpack.c.l.b16 %v232
  %v248 = vunpack.c.l.b16 %v233
  %v249 = vpack.c.b16 %v246, %v245
  %v250 = vpack.c.b16 %v248, %v247
  %v254 = vsel %vm178, %v229, 0
  %256 = vmatprep.subr.bf16.mxu0 0
  %257 = vmatpush1.bf16.msra.mxu0 %v249
  %258 = vmatprep.subr.bf16.mxu0 0
  %259 = vmatpush1.bf16.msra.mxu0 %v250
  %260 = vmatprep.subr.bf16.mxu0 0
  %261 = vmatpush1.bf16.msra.mxu0 0
  %262 = vmatprep.subr.bf16.mxu0 0
  %263 = vmatpush1.bf16.msra.mxu0 0
  %264 = vmatprep.subr.bf16.mxu0 0
  %265 = vmatpush1.bf16.msra.mxu0 0
  %266 = vmatprep.subr.bf16.mxu0 0
  %267 = vmatpush1.bf16.msra.mxu0 0
  %268 = vmatprep.subr.bf16.mxu0 0
  %269 = vmatpush1.bf16.msra.mxu0 0
  %270 = vmatprep.subr.bf16.mxu0 0
  %271 = vmatpush1.bf16.msra.mxu0 0
  %272 = vmatprep.subr.bf16.mxu0 0
  %273 = vmatpush1.bf16.msra.mxu0 0
  %274 = vmatprep.subr.bf16.mxu0 0
  %275 = vmatpush1.bf16.msra.mxu0 0
  %276 = vmatprep.subr.bf16.mxu0 0
  %277 = vmatpush1.bf16.msra.mxu0 0
  %278 = vmatprep.subr.bf16.mxu0 0
  %279 = vmatpush1.bf16.msra.mxu0 0
  %280 = vmatprep.subr.bf16.mxu0 0
  %281 = vmatpush1.bf16.msra.mxu0 0
  %282 = vmatprep.subr.bf16.mxu0 0
  %283 = vmatpush1.bf16.msra.mxu0 0
  %284 = vmatprep.subr.bf16.mxu0 0
  %285 = vmatpush1.bf16.msra.mxu0 0
  %286 = vmatprep.subr.bf16.mxu0 0
  %287 = vmatpush1.bf16.msra.mxu0 0
  %288 = vmatprep.mubr.bf16.mxu0 0
  %289 = vmatmul.mubr.bf16.gmra.mrb[0].mxu0 %v254
  %v290 = vpop.f32.mrb[0].mxu0
  %v291 = vadd.f32 %v239, %v290
  %v292 = vpop.f32.mrb[0].mxu0
  %v293 = vpop.f32.mrb[0].mxu0
  %v294 = vadd.f32 %v239, %v293
  %v295 = vpop.f32.mrb[0].mxu0
  %296 = vdwg.mxu0
  %v297 = vpack.c.bf16 %v294, %v291
  %v299 = vunpack.c.l.b16 %v297
  %v300 = vunpack.c.h.b16 %v297
  %v301 = vpack.c.b16 %v299, %v299
  %v302 = vpack.c.b16 %v300, %v300
  %305 = vst [vmem:[%s9] sm:$0xf] %v301
  %306 = vst [vmem:[%s9 + $0x4] sm:$0xf] %v302
  // Predicated region
  $region38: #{qnetwork_forward.1} parent=0 // pred_check
    _
  $region39: #{qnetwork_forward.1} parent=0 // pred_check_branch
    %308 = sbr.rel (0) target = $region41
  $region40: #{qnetwork_forward.1} parent=0 // pred_region
    _
  $region41: #{qnetwork_forward.1} parent=0 // pred_fallthru
    _
  // Predicated region
  $region42: #{qnetwork_forward.1} parent=0 // pred_check
    _
  $region43: #{qnetwork_forward.1} parent=0 // pred_check_branch
    %310 = sbr.rel (0) target = $region45
  $region44: #{qnetwork_forward.1} parent=0 // pred_region
    _
  $region45: #{qnetwork_forward.1} parent=0 // pred_fallthru
    _

</llo_original>
